<compile_context>
chip_gen: v7x
topology: tpu7x:2x2x1
jax: 0.10.0
libtpu: 0.0.40
codegen_flags: <defaults>
</compile_context>

<pallas_src>
import functools

import jax
import jax.numpy as jnp
from jax import lax
from jax.experimental import pallas as pl
from jax.experimental.pallas import tpu as pltpu


def _upsample_nearest(x2d, h, w, c, u):
    """Nearest-neighbour upsample of a flattened (h*w, c) image to (u*h, u*w, c)."""
    xw = jnp.broadcast_to(x2d.reshape(h * w, 1, c), (h * w, u, c)).reshape(h, u * w, c)
    return jnp.broadcast_to(xw.reshape(h, 1, u * w, c),
                            (h, u, u * w, c)).reshape(u * h, u * w, c)


def _spatial_indices(rows, cols):
    """Flattened (rows*cols, 1) int32 row / col indices (built once, hoisted)."""
    r = lax.broadcasted_iota(jnp.int32, (rows, cols, 1), 0).reshape(rows * cols, 1)
    c = lax.broadcasted_iota(jnp.int32, (rows, cols, 1), 1).reshape(rows * cols, 1)
    return r, c


def _tap(h2d, a, b, rows, cols, row_idx, col_idx):
    """Conv tap t(i, j) = h(i + a, j + b) with zero padding.

    h2d is the flattened (rows*cols, C) image.  The shift rides the XLU
    (pltpu.roll on the sublane axis) instead of misaligned sublane slices,
    and zero padding is a VPU select against precomputed index masks.
    """
    if a == 0 and b == 0:
        return h2d
    n = rows * cols
    t = pltpu.roll(h2d, (-(a * cols + b)) % n, axis=0)
    conds = []
    if a < 0:
        conds.append(row_idx >= -a)
    if a > 0:
        conds.append(row_idx < rows - a)
    if b < 0:
        conds.append(col_idx >= -b)
    if b > 0:
        conds.append(col_idx < cols - b)
    ok = conds[0]
    for cnd in conds[1:]:
        ok = jnp.logical_and(ok, cnd)
    return jnp.where(ok, t, jnp.zeros_like(t))


def _act(h, neg_slope):
    if neg_slope == 0.0:                      # specialised: plain relu, no select
        return jnp.maximum(h, 0.0)
    return jnp.where(h > 0, h, neg_slope * h)


def _stats_kernel(x_ref, s_ref):
    """Pass 1: per-image channel sum and sum-of-squares of x (bn1 statistics)."""
    H, W, C = x_ref.shape
    x = x_ref[...].reshape(H * W, C)
    s_ref[...] = jnp.concatenate(
        [jnp.sum(x, axis=0, keepdims=True),
         jnp.sum(x * x, axis=0, keepdims=True)], axis=0)


def _conv1_kernel(x_ref, a1_ref, c1_ref, w1p_ref, y1_ref, s2_ref, *, neg_slope):
    """Pass 2: bn1 -> lrelu -> polyphase conv1, fused bn2 partial statistics."""
    H, W, Cin = x_ref.shape
    Hh, Wh, Cout = y1_ref.shape
    hw = H * W

    # bn1 (batch stats + affine folded to scale/shift in the wrapper) + pre-act.
    h = a1_ref[...] * x_ref[...].reshape(hw, Cin) + c1_ref[...]
    h = _act(h, neg_slope)

    row_idx, col_idx = _spatial_indices(H, W)

    # Polyphase conv1: four 2x2 convs at LOW resolution, one per output phase.
    # Each of the 9 low-res taps feeds the phases that use it (16 small
    # accumulating matmuls, bf16 operands, f32 accumulation) -- no im2col slab.
    accs = [jnp.zeros((hw, Cout), jnp.float32) for _ in range(4)]
    for a in (-1, 0, 1):
        for b in (-1, 0, 1):
            tap = _tap(h, a, b, H, W, row_idx, col_idx).astype(w1p_ref.dtype)
            for pi in (0, 1):
                ry = a - pi + 1
                if ry not in (0, 1):
                    continue
                for pj in (0, 1):
                    rx = b - pj + 1
                    if rx not in (0, 1):
                        continue
                    ph = pi * 2 + pj
                    accs[ph] = accs[ph] + jnp.dot(
                        tap, w1p_ref[(ph * 2 + ry) * 2 + rx],
                        preferred_element_type=jnp.float32)

    # bn2 partial statistics for this image (from the f32 phase accumulators;
    # identical to the statistics of the interleaved high-res output).
    s_sum = sum(jnp.sum(p, axis=0, keepdims=True) for p in accs)
    s_sq = sum(jnp.sum(p * p, axis=0, keepdims=True) for p in accs)
    s2_ref[...] = jnp.concatenate([s_sum, s_sq], axis=0)

    # Interleave the four phases into (Hh, Wh, Cout): broadcast-upsample each
    # phase (VPU only) and select on row / column parity.
    p00, p01, p10, p11 = [p.astype(y1_ref.dtype) for p in accs]
    col_even = (lax.broadcasted_iota(jnp.int32, (1, Wh, 1), 1) & 1) == 0
    row_even = (lax.broadcasted_iota(jnp.int32, (Hh, 1, 1), 0) & 1) == 0

    def upw(v):  # (H*W, C) -> (H, Wh, C): duplicate every column
        return jnp.broadcast_to(v.reshape(hw, 1, Cout), (hw, 2, Cout)).reshape(H, Wh, Cout)

    def uph(v):  # (H, Wh, C) -> (Hh, Wh, C): duplicate every row
        return jnp.broadcast_to(v.reshape(H, 1, Wh, Cout),
                                (H, 2, Wh, Cout)).reshape(Hh, Wh, Cout)

    q_even = jnp.where(col_even, upw(p00), upw(p01))
    q_odd = jnp.where(col_even, upw(p10), upw(p11))
    y1_ref[...] = jnp.where(row_even, uph(q_even), uph(q_odd))


def _conv2_kernel(y1_ref, x_ref, a2_ref, c2_ref, w2_ref, wskip_ref, out_ref, *,
                  neg_slope, up_size):
    """Pass 3: bn2 -> lrelu -> conv2, plus the skip path staged late."""
    Hh, Wh, Cout = out_ref.shape
    H, W, Cin = x_ref.shape
    hw = Hh * Wh

    h = a2_ref[...] * y1_ref[...].astype(jnp.float32).reshape(hw, Cout) + c2_ref[...]
    h = _act(h, neg_slope)

    row_idx, col_idx = _spatial_indices(Hh, Wh)

    # 3x3 conv2 as 9 accumulating matmuls; every tap comes from the in-register
    # activation via roll + mask (no padded scratch, no misaligned slices).
    acc = jnp.zeros((hw, Cout), jnp.float32)
    for dy, a in enumerate((-1, 0, 1)):
        for dx, b in enumerate((-1, 0, 1)):
            tap = _tap(h, a, b, Hh, Wh, row_idx, col_idx).astype(w2_ref.dtype)
            acc = acc + jnp.dot(tap, w2_ref[dy * 3 + dx],
                                preferred_element_type=jnp.float32)

    # Skip path (staged late to limit live ranges): 1x1 conv at LOW resolution,
    # then nearest upsample (commutes exactly for nearest-neighbour).
    xl = x_ref[...].reshape(H * W, Cin).astype(wskip_ref.dtype)
    skip = jnp.dot(xl, wskip_ref[...], preferred_element_type=jnp.float32)
    skip_up = _upsample_nearest(skip, H, W, Cout, up_size)

    # TODO(synk): with the tiny demo channel counts (4/8) these NHWC stores are
    # lane-masked; production needs Cout>=128 (or a channel-major / Wh-major
    # store) for lane-dense store utilisation.
    out_ref[...] = acc.reshape(Hh, Wh, Cout) + skip_up


def _polyphase_weights(w1, matmul_dtype):
    """Fold the nearest-2x upsample into conv1: 4 per-phase 2x2 weight sets.

    Output phase (pi, pj) of "upsample then 3x3 conv" only sees low-res rows
    {i-1, i} (pi=0) or {i, i+1} (pi=1), likewise for columns, so the 9 taps
    collapse to 4 per phase with summed weights.  Returns (16, Cin, Cout) with
    index ((pi*2 + pj)*2 + ry)*2 + rx.
    """
    r0 = jnp.stack([w1[0], w1[1] + w1[2]], axis=0)      # pi=0: rows (i-1, i)
    r1 = jnp.stack([w1[0] + w1[1], w1[2]], axis=0)      # pi=1: rows (i, i+1)

    def cols(r, pj):
        if pj == 0:                                      # cols (j-1, j)
            return jnp.stack([r[:, 0], r[:, 1] + r[:, 2]], axis=1)
        return jnp.stack([r[:, 0] + r[:, 1], r[:, 2]], axis=1)   # cols (j, j+1)

    k = jnp.stack([cols(r0, 0), cols(r0, 1), cols(r1, 0), cols(r1, 1)], axis=0)
    cin, cout = w1.shape[2], w1.shape[3]
    return k.reshape(16, cin, cout).astype(matmul_dtype)


def resblock_up(x_nchw, params, *, up_size=2, neg_slope=0.0, eps=1e-5,
                matmul_dtype=jnp.bfloat16):
    """Forward pass of ResBlockUp. Input/output are NCHW like PyTorch."""
    w_skip, w1, w2 = params["w_skip"], params["w1"], params["w2"]
    g1, b1, g2, b2 = params["g1"], params["b1"], params["g2"], params["b2"]

    N, Cin, H, W = x_nchw.shape
    Cout = w_skip.shape[1]
    Hh, Wh = up_size * H, up_size * W
    assert up_size == 2, "polyphase conv1 decomposition is specialised to up_size=2"
    assert W % 8 == 0, "width must be a multiple of the 8-sublane tile"

    # TODO(synk): for production, accept NHWC in/out (or store the pass-3 tile
    # channel-major in-kernel) to remove these two whole-array HBM transposes.
    x_nhwc = jnp.transpose(x_nchw, (0, 2, 3, 1)).astype(jnp.float32)

    w1p = _polyphase_weights(w1, matmul_dtype)               # (16, Cin, Cout)
    w2_t = w2.reshape(9, Cout, Cout).astype(matmul_dtype)    # index = dy*3 + dx
    w_skip_m = w_skip.astype(matmul_dtype)                   # (Cin, Cout)

    # 64 MiB scoped-VMEM cap: above the 16/32 MiB defaults, within physical
    # VMEM on v5e / v6e / v7x.
    cparams = pltpu.CompilerParams(dimension_semantics=("parallel",),
                                   vmem_limit_bytes=64 * 1024 * 1024)

    # ---- pass 1: bn1 batch statistics (per-image partials, tiled over N) ----
    stats1 = pl.pallas_call(
        _stats_kernel,
        out_shape=jax.ShapeDtypeStruct((N, 2, Cin), jnp.float32),
        grid=(N,),
        in_specs=[pl.BlockSpec((None, H, W, Cin), lambda n: (n, 0, 0, 0))],
        out_specs=pl.BlockSpec((None, 2, Cin), lambda n: (n, 0, 0)),
        compiler_params=cparams,
    )(x_nhwc)

    def fold_bn(stats, count, g, b):
        # (C,)-sized parameter math between passes: reduce per-image partials
        # and fold biased (training-mode) batch stats into a scale/shift pair.
        # TODO(synk): E[x^2]-E[x]^2 in f32 can cancel for large, non-centred
        # activations; switch to a centred second pass if tolerances tighten.
        # TODO(synk): running_mean/var momentum update is a training-only buffer
        # mutation with no effect on the forward output; not modelled here.
        s = jnp.sum(stats[:, 0, :], axis=0)
        ss = jnp.sum(stats[:, 1, :], axis=0)
        mu = s / count
        var = ss / count - mu * mu
        a = g * lax.rsqrt(var + eps)
        return a.reshape(1, -1), (b - mu * a).reshape(1, -1)

    a1, c1 = fold_bn(stats1, N * H * W, g1, b1)

    # ---- pass 2: bn1 -> lrelu -> polyphase conv1 (+ bn2 partial stats) ----
    kern2 = functools.partial(_conv1_kernel, neg_slope=neg_slope)
    y1, stats2 = pl.pallas_call(
        kern2,
        out_shape=(jax.ShapeDtypeStruct((N, Hh, Wh, Cout), matmul_dtype),
                   jax.ShapeDtypeStruct((N, 2, Cout), jnp.float32)),
        grid=(N,),
        in_specs=[pl.BlockSpec((None, H, W, Cin), lambda n: (n, 0, 0, 0)),
                  pl.BlockSpec((1, Cin), lambda n: (0, 0)),
                  pl.BlockSpec((1, Cin), lambda n: (0, 0)),
                  pl.BlockSpec((16, Cin, Cout), lambda n: (0, 0, 0))],
        out_specs=(pl.BlockSpec((None, Hh, Wh, Cout), lambda n: (n, 0, 0, 0)),
                   pl.BlockSpec((None, 2, Cout), lambda n: (n, 0, 0))),
        compiler_params=cparams,
    )(x_nhwc, a1, c1, w1p)

    a2, c2 = fold_bn(stats2, N * Hh * Wh, g2, b2)

    # ---- pass 3: bn2 -> lrelu -> conv2, + skip (1x1 conv at low res, upsampled) ----
    kern3 = functools.partial(_conv2_kernel, neg_slope=neg_slope, up_size=up_size)
    out_nhwc = pl.pallas_call(
        kern3,
        out_shape=jax.ShapeDtypeStruct((N, Hh, Wh, Cout), jnp.float32),
        grid=(N,),
        in_specs=[pl.BlockSpec((None, Hh, Wh, Cout), lambda n: (n, 0, 0, 0)),
                  pl.BlockSpec((None, H, W, Cin), lambda n: (n, 0, 0, 0)),
                  pl.BlockSpec((1, Cout), lambda n: (0, 0)),
                  pl.BlockSpec((1, Cout), lambda n: (0, 0)),
                  pl.BlockSpec((9, Cout, Cout), lambda n: (0, 0, 0)),
                  pl.BlockSpec((Cin, Cout), lambda n: (0, 0))],
        out_specs=pl.BlockSpec((None, Hh, Wh, Cout), lambda n: (n, 0, 0, 0)),
        compiler_params=cparams,
    )(y1, x_nhwc, a2, c2, w2_t, w_skip_m)

    # TODO(synk): for images whose per-image tiles no longer fit VMEM (v7x has
    # only 64 MiB), add a row-block grid axis with 1-row halos next to the batch
    # axis; for production channel counts, pad Cout to the native MXU width
    # (128 on v5e, 256 on v6e/v7x).
    return jnp.transpose(out_nhwc, (0, 3, 1, 2))


def _reference(x, params, *, up_size=2, neg_slope=0.0, eps=1e-5):
    """Pure-JAX NCHW reference mirroring the PyTorch module (training-mode BN)."""
    dn = ("NCHW", "HWIO", "NCHW")

    def conv(z, w, pad):
        return jax.lax.conv_general_dilated(
            z, w, (1, 1), ((pad, pad), (pad, pad)), dimension_numbers=dn)

    def bn(z, g, b):
        mu = jnp.mean(z, axis=(0, 2, 3), keepdims=True)
        var = jnp.mean((z - mu) ** 2, axis=(0, 2, 3), keepdims=True)
        return ((z - mu) * jax.lax.rsqrt(var + eps) * g.reshape(1, -1, 1, 1)
                + b.reshape(1, -1, 1, 1))

    def lrelu(z):
        return jnp.where(z > 0, z, neg_slope * z)

    def up(z):
        return jnp.repeat(jnp.repeat(z, up_size, axis=2), up_size, axis=3)

    skip = conv(up(x), params["w_skip"][None, None], 0)
    z = lrelu(bn(x, params["g1"], params["b1"]))
    z = conv(up(z), params["w1"], 1)
    z = lrelu(bn(z, params["g2"], params["b2"]))
    z = conv(z, params["w2"], 1)
    return z + skip


if __name__ == "__main__":
    N, Cin, Cout, H, W = 2, 4, 8, 16, 16
    keys = jax.random.split(jax.random.PRNGKey(0), 8)
    params = dict(
        w_skip=0.3 * jax.random.normal(keys[0], (Cin, Cout), jnp.float32),
        w1=0.2 * jax.random.normal(keys[1], (3, 3, Cin, Cout), jnp.float32),
        w2=0.2 * jax.random.normal(keys[2], (3, 3, Cout, Cout), jnp.float32),
        g1=1.0 + 0.1 * jax.random.normal(keys[3], (Cin,), jnp.float32),
        b1=0.1 * jax.random.normal(keys[4], (Cin,), jnp.float32),
        g2=1.0 + 0.1 * jax.random.normal(keys[5], (Cout,), jnp.float32),
        b2=0.1 * jax.random.normal(keys[6], (Cout,), jnp.float32),
    )
    x = jax.random.normal(keys[7], (N, Cin, H, W), jnp.float32)

    out = jax.block_until_ready(resblock_up(x, params))
    ref = jax.block_until_ready(_reference(x, params))

    assert out.shape == (N, Cout, 2 * H, 2 * W), out.shape
    assert jnp.allclose(out, ref, rtol=5e-2, atol=5e-2), \
        float(jnp.max(jnp.abs(out - ref)))
    print("KERNEL_OK")
</pallas_src>

<mosaic_0001>
module attributes {stable_mosaic.version = 11 : i64} {
  func.func @_stats_kernel(%arg0: i32, %arg1: memref<1x16x16x4xf32, #tpu.memory_space<vmem>>, %arg2: memref<1x2x4xf32, #tpu.memory_space<vmem>>) attributes {dimension_semantics = [#tpu.dimension_semantics<parallel>], iteration_bounds = array<i64: 2>, scalar_prefetch = 0 : i64, scratch_operands = 0 : i64, tpu.core_type = #tpu.core_type<tc>, window_params = [{transform_indices = @transform_0, window_bounds = array<i64: 1, 16, 16, 4>}, {transform_indices = @transform_1, window_bounds = array<i64: 1, 2, 4>}]} {
    %c0 = arith.constant 0 : index
    %c0_0 = arith.constant 0 : index
    %c0_1 = arith.constant 0 : index
    %c0_2 = arith.constant 0 : index
    %0 = vector.load %arg1[%c0, %c0_0, %c0_1, %c0_2] : memref<1x16x16x4xf32, #tpu.memory_space<vmem>>, vector<1x16x16x4xf32>
    %1 = vector.shape_cast %0 : vector<1x16x16x4xf32> to vector<16x16x4xf32>
    %2 = vector.shape_cast %1 : vector<16x16x4xf32> to vector<256x4xf32>
    %cst = arith.constant dense<0.000000e+00> : vector<4xf32>
    %3 = vector.multi_reduction <add>, %2, %cst [0] : vector<256x4xf32> to vector<4xf32>
    %4 = vector.shape_cast %3 : vector<4xf32> to vector<1x4xf32>
    %5 = arith.mulf %2, %2 : vector<256x4xf32>
    %cst_3 = arith.constant dense<0.000000e+00> : vector<4xf32>
    %6 = vector.multi_reduction <add>, %5, %cst_3 [0] : vector<256x4xf32> to vector<4xf32>
    %7 = vector.shape_cast %6 : vector<4xf32> to vector<1x4xf32>
    %8 = tpu.concatenate %4, %7 in 0 : vector<1x4xf32>, vector<1x4xf32> -> vector<2x4xf32>
    %c0_4 = arith.constant 0 : index
    %c0_5 = arith.constant 0 : index
    %c0_6 = arith.constant 0 : index
    %9 = vector.load %arg2[%c0_4, %c0_5, %c0_6] : memref<1x2x4xf32, #tpu.memory_space<vmem>>, vector<1x2x4xf32>
    %10 = vector.shape_cast %9 : vector<1x2x4xf32> to vector<2x4xf32>
    %11 = vector.shape_cast %8 : vector<2x4xf32> to vector<1x2x4xf32>
    tpu.vector_store %arg2[%c0_4, %c0_5, %c0_6], %11 {strides = array<i32>} : memref<1x2x4xf32, #tpu.memory_space<vmem>>, vector<1x2x4xf32>,
    return
  }
  func.func @transform_0(%arg0: i32) -> (i32, i32, i32, i32) {
    %c0_i32 = arith.constant 0 : i32
    %c0_i32_0 = arith.constant 0 : i32
    %c0_i32_1 = arith.constant 0 : i32
    %c0_i32_2 = arith.constant 0 : i32
    return %arg0, %c0_i32, %c0_i32_0, %c0_i32_1 : i32, i32, i32, i32
  }
  func.func @transform_1(%arg0: i32) -> (i32, i32, i32) {
    %c0_i32 = arith.constant 0 : i32
    %c0_i32_0 = arith.constant 0 : i32
    %c0_i32_1 = arith.constant 0 : i32
    return %arg0, %c0_i32, %c0_i32_0 : i32, i32, i32
  }
}

</mosaic_0001>

<llo_original>
// kernel: tpu_custom_call.1
$region0: #{tpu_custom_call.1}
  #allocation0 [shape = 'u32[]', space=smem, size = 0x4, offset = 0x4, fixed_abs, tag = 'smem constant byte address 0x4 - core index']
  #allocation1 [shape = 'u32[144,128]{1,0:T(1,128)}', space=vmem, size = 0x12000, scoped, tag = 'internal scratch']
  %s0 = inlined_call_operand.hbm [shape: f32[2,16,16,4], index: 0, kind: input, shape index: {}]
  %s1 = inlined_call_operand.hbm [shape: f32[2,2,4], index: 1, kind: output, shape index: {}]
  %s2 = sld [smem:[#allocation0]]
  $region41: #{tpu_custom_call.1} parent=0
    _
  %s4 = ssub.s32 1, %s2
  %s5 = scalar_select 0, %s4, %s2
  $region1: #{tpu_custom_call.1} parent=0
    #allocation2 [shape = 'u8[262144]{0}', space=vmem, size = 0x40000, scoped, tag = 'input window, operand 0']
    #allocation3 [shape = 's32[2]{0}', space=sflag, size = 0x8, scoped, tag = 'scoped memory for tpu_custom_call.1']
    #allocation4 [shape = 's32[2]{0}', space=sflag, size = 0x8, scoped, tag = 'scoped memory for tpu_custom_call.1']
    #allocation5 [shape = 'u8[2048]{0}', space=vmem, size = 0x800, scoped, tag = 'output window, operand 0']
    %6 = vsyncpa [#allocation3], 0
    %s7 = scalar_lea.sflag [#allocation3], 1
    %8 = vsyncpa %s7, 0
    %9 = vsyncpa [#allocation4], 0
    %s10 = scalar_lea.sflag [#allocation4], 1
    %11 = vsyncpa %s10, 0
    loop: start=0, step=1, limit=4
    $region2: #{tpu_custom_call.1} parent=1 // loop_pre_header
      _
    $region3: #{tpu_custom_call.1} parent=1 // loop_header
      %s13 = sphi 0, %s17
      %p14 = scmp.ge.s32.totalorder %s13, 4
      %s23 = sphi 0, %s25
      %s26 = sphi 0, %s23
      %s27 = sphi 0, %s26
      %s43 = sphi 0, %s27
      %s49 = sphi 0, %s51
      %s52 = sphi 0, %s49
      %s53 = sphi 0, %s52
      %s69 = sphi 0, %s53
    $region4: #{tpu_custom_call.1} parent=1 // loop_header_branch
      %16 = sbr.rel (%p14) target = $region8
    $region5: #{tpu_custom_call.1} parent=1 // loop_body
      %s18 = ssub.s32 %s13, 1
      %s19 = ssub.s32 %s13, 2
      %s20 = sadd.s32 %s13, 1
      %s21 = ssub.s32 %s13, %s20
      %p22 = scmp.eq.s32.totalorder %s21, 0
      %s24 = sadd.s32 %s23, 1
      %s25 = scalar_select %p22, %s23, %s24
      %p28 = pneg %p22
      %p29 = scmp.eq.s32.totalorder %s13, 1
      %p30 = por %p28, %p29
      %p31 = scmp.ne.s32.totalorder %s23, %s26
      %p32 = scmp.eq.s32.totalorder %s13, 0
      %p33 = por %p31, %p32
      %p34 = scmp.ne.s32.totalorder %s23, %s26
      %p35 = scmp.eq.s32.totalorder %s18, 1
      %p36 = por %p34, %p35
      %p37 = scmp.ne.s32.totalorder %s26, %s27
      %p38 = scmp.eq.s32.totalorder %s18, 0
      %p39 = por %p37, %p38
      %p40 = scmp.ne.s32.totalorder %s26, %s27
      %p41 = scmp.eq.s32.totalorder %s19, 1
      %p42 = por %p40, %p41
      %p44 = scmp.ne.s32.totalorder %s27, %s43
      %p45 = scmp.eq.s32.totalorder %s19, 0
      %p46 = por %p44, %p45
      %s47 = ssub.s32 %s13, %s20
      %p48 = scmp.eq.s32.totalorder %s47, 0
      %s50 = sadd.s32 %s49, 1
      %s51 = scalar_select %p48, %s49, %s50
      %p54 = pneg %p48
      %p55 = scmp.eq.s32.totalorder %s13, 1
      %p56 = por %p54, %p55
      %p57 = scmp.ne.s32.totalorder %s49, %s52
      %p58 = scmp.eq.s32.totalorder %s13, 0
      %p59 = por %p57, %p58
      %p60 = scmp.ne.s32.totalorder %s49, %s52
      %p61 = scmp.eq.s32.totalorder %s18, 1
      %p62 = por %p60, %p61
      %p63 = scmp.ne.s32.totalorder %s52, %s53
      %p64 = scmp.eq.s32.totalorder %s18, 0
      %p65 = por %p63, %p64
      %p66 = scmp.ne.s32.totalorder %s52, %s53
      %p67 = scmp.eq.s32.totalorder %s19, 1
      %p68 = por %p66, %p67
      %p70 = scmp.ne.s32.totalorder %s53, %s69
      %p71 = scmp.eq.s32.totalorder %s19, 0
      %p72 = por %p70, %p71
      %p73 = scmp.le.s32.totalorder 1, %s13
      %p74 = scmp.lt.s32.totalorder %s13, 3
      %p75 = pnand %p73, %p74
      %p76 = pneg %p75
      // Predicated region
      $region9: #{tpu_custom_call.1} parent=5 // pred_check
        _
      $region10: #{tpu_custom_call.1} parent=5 // pred_check_branch
        %78 = sbr.rel (%p75) target = $region12
      $region11: #{tpu_custom_call.1} parent=5 // pred_region
        %s79 = ssub.s32 %s13, 1
      $region12: #{tpu_custom_call.1} parent=5 // pred_fallthru
        _
      %p80 = scmp.lt.s32.totalorder %s13, 2
      // Predicated region
      $region13: #{tpu_custom_call.1} parent=5 // pred_check
        %p81 = pneg %p80
      $region14: #{tpu_custom_call.1} parent=5 // pred_check_branch
        %83 = sbr.rel (%p81) target = $region16
      $region15: #{tpu_custom_call.1} parent=5 // pred_region
        // Predicated region
        $region17: #{tpu_custom_call.1} parent=15 // pred_check
          %p84 = pneg %p33
        $region18: #{tpu_custom_call.1} parent=15 // pred_check_branch
          %86 = sbr.rel (%p84) target = $region20
        $region19: #{tpu_custom_call.1} parent=15 // pred_region
          %s87 = sand.u32 %s23, 1
          %s88 = scalar_lea.sflag [#allocation3], %s87
          %s89 = sand.u32 %s23, 1
          %s90 = smul.addr %s89, 256
          %s91 = scalar_lea.vmem [#allocation2], %s90
          %s93 = ssub.s32 4096, 4096
          %94 = vsyncadd %s88, %s93
          %s95 = smul.addr %s13, 32
          %s96 = smul.addr %s95, 128
          %s97 = scalar_lea.hbm %s0, %s96
          %s98 = sshll.u32 %s91, 4
          %s99 = int_to_ptr.vmem [resolvable:$true] %s98
          %104 = dma.hbm_to_vmem [thread:$0]  %s97, 4096, %s99, %s88, 128, 128, 8
        $region20: #{tpu_custom_call.1} parent=15 // pred_fallthru
          _
      $region16: #{tpu_custom_call.1} parent=5 // pred_fallthru
        _
      %p105 = scmp.le.s32.totalorder 1, %s13
      %p106 = scmp.lt.s32.totalorder %s13, 3
      %p107 = pnand %p105, %p106
      %p108 = pneg %p107
      // Predicated region
      $region21: #{tpu_custom_call.1} parent=5 // pred_check
        _
      $region22: #{tpu_custom_call.1} parent=5 // pred_check_branch
        %110 = sbr.rel (%p107) target = $region24
      $region23: #{tpu_custom_call.1} parent=5 // pred_region
        %s111 = ssub.s32 %s13, 1
        %s112 = sand.u32 %s26, 1
        %s113 = scalar_lea.sflag [#allocation3], %s112
        %s114 = sand.u32 %s26, 1
        %s115 = smul.addr %s114, 256
        %s116 = scalar_lea.vmem [#allocation2], %s115
        // Predicated region
        $region25: #{tpu_custom_call.1} parent=23 // pred_check
          %p117 = pneg %p39
        $region26: #{tpu_custom_call.1} parent=23 // pred_check_branch
          %119 = sbr.rel (%p117) target = $region28
        $region27: #{tpu_custom_call.1} parent=23 // pred_region
          %120 = dma.done %s113, 4096
        $region28: #{tpu_custom_call.1} parent=23 // pred_fallthru
          _
        %s121 = sand.u32 %s26, 1
        %s122 = scalar_lea.sflag [#allocation3], %s121
        %s123 = sand.u32 %s26, 1
        %s124 = smul.addr %s123, 256
        %s125 = scalar_lea.vmem [#allocation2], %s124
        %p126 = pneg %p39
        %p127 = pneg %p36
        %p128 = pneg %p65
        %p129 = pneg %p62
        %s130 = sand.u32 %s52, 1
        %s131 = scalar_lea.sflag [#allocation4], %s130
        %s132 = sand.u32 %s52, 1
        %s133 = smul.addr %s132, 2
        %s134 = scalar_lea.vmem [#allocation5], %s133
        %v135 = vld [vmem:[%s116] sm:$0xff]
        %v136 = vld [vmem:[%s116 + $0x8] sm:$0xff]
        %v137 = vld [vmem:[%s116 + $0x10] sm:$0xff]
        %v138 = vld [vmem:[%s116 + $0x18] sm:$0xff]
        %v139 = vld [vmem:[%s116 + $0x20] sm:$0xff]
        %v140 = vld [vmem:[%s116 + $0x28] sm:$0xff]
        %v141 = vld [vmem:[%s116 + $0x30] sm:$0xff]
        %v142 = vld [vmem:[%s116 + $0x38] sm:$0xff]
        %v143 = vld [vmem:[%s116 + $0x40] sm:$0xff]
        %v144 = vld [vmem:[%s116 + $0x48] sm:$0xff]
        %v145 = vld [vmem:[%s116 + $0x50] sm:$0xff]
        %v146 = vld [vmem:[%s116 + $0x58] sm:$0xff]
        %v147 = vld [vmem:[%s116 + $0x60] sm:$0xff]
        %v148 = vld [vmem:[%s116 + $0x68] sm:$0xff]
        %v149 = vld [vmem:[%s116 + $0x70] sm:$0xff]
        %v150 = vld [vmem:[%s116 + $0x78] sm:$0xff]
        %v151 = vld [vmem:[%s116 + $0x80] sm:$0xff]
        %v152 = vld [vmem:[%s116 + $0x88] sm:$0xff]
        %v153 = vld [vmem:[%s116 + $0x90] sm:$0xff]
        %v154 = vld [vmem:[%s116 + $0x98] sm:$0xff]
        %v155 = vld [vmem:[%s116 + $0xa0] sm:$0xff]
        %v156 = vld [vmem:[%s116 + $0xa8] sm:$0xff]
        %v157 = vld [vmem:[%s116 + $0xb0] sm:$0xff]
        %v158 = vld [vmem:[%s116 + $0xb8] sm:$0xff]
        %v159 = vld [vmem:[%s116 + $0xc0] sm:$0xff]
        %v160 = vld [vmem:[%s116 + $0xc8] sm:$0xff]
        %v161 = vld [vmem:[%s116 + $0xd0] sm:$0xff]
        %v162 = vld [vmem:[%s116 + $0xd8] sm:$0xff]
        %v163 = vld [vmem:[%s116 + $0xe0] sm:$0xff]
        %v164 = vld [vmem:[%s116 + $0xe8] sm:$0xff]
        %v165 = vld [vmem:[%s116 + $0xf0] sm:$0xff]
        %v166 = vld [vmem:[%s116 + $0xf8] sm:$0xff]
        %vm167 = vcmask 31744
        %v168 = vsel %vm167, %v135, 0.0
        %v169 = vsel %vm167, %v136, 0.0
        %v170 = vadd.f32 %v168, %v169
        %v171 = vsel %vm167, %v137, 0.0
        %v172 = vadd.f32 %v170, %v171
        %v173 = vsel %vm167, %v138, 0.0
        %v174 = vadd.f32 %v172, %v173
        %v175 = vsel %vm167, %v139, 0.0
        %v176 = vadd.f32 %v174, %v175
        %v177 = vsel %vm167, %v140, 0.0
        %v178 = vadd.f32 %v176, %v177
        %v179 = vsel %vm167, %v141, 0.0
        %v180 = vadd.f32 %v178, %v179
        %v181 = vsel %vm167, %v142, 0.0
        %v182 = vadd.f32 %v180, %v181
        %v183 = vsel %vm167, %v143, 0.0
        %v184 = vadd.f32 %v182, %v183
        %v185 = vsel %vm167, %v144, 0.0
        %v186 = vadd.f32 %v184, %v185
        %v187 = vsel %vm167, %v145, 0.0
        %v188 = vadd.f32 %v186, %v187
        %v189 = vsel %vm167, %v146, 0.0
        %v190 = vadd.f32 %v188, %v189
        %v191 = vsel %vm167, %v147, 0.0
        %v192 = vadd.f32 %v190, %v191
        %v193 = vsel %vm167, %v148, 0.0
        %v194 = vadd.f32 %v192, %v193
        %v195 = vsel %vm167, %v149, 0.0
        %v196 = vadd.f32 %v194, %v195
        %v197 = vsel %vm167, %v150, 0.0
        %v198 = vadd.f32 %v196, %v197
        %v199 = vsel %vm167, %v151, 0.0
        %v200 = vadd.f32 %v198, %v199
        %v201 = vsel %vm167, %v152, 0.0
        %v202 = vadd.f32 %v200, %v201
        %v203 = vsel %vm167, %v153, 0.0
        %v204 = vadd.f32 %v202, %v203
        %v205 = vsel %vm167, %v154, 0.0
        %v206 = vadd.f32 %v204, %v205
        %v207 = vsel %vm167, %v155, 0.0
        %v208 = vadd.f32 %v206, %v207
        %v209 = vsel %vm167, %v156, 0.0
        %v210 = vadd.f32 %v208, %v209
        %v211 = vsel %vm167, %v157, 0.0
        %v212 = vadd.f32 %v210, %v211
        %v213 = vsel %vm167, %v158, 0.0
        %v214 = vadd.f32 %v212, %v213
        %v215 = vsel %vm167, %v159, 0.0
        %v216 = vadd.f32 %v214, %v215
        %v217 = vsel %vm167, %v160, 0.0
        %v218 = vadd.f32 %v216, %v217
        %v219 = vsel %vm167, %v161, 0.0
        %v220 = vadd.f32 %v218, %v219
        %v221 = vsel %vm167, %v162, 0.0
        %v222 = vadd.f32 %v220, %v221
        %v223 = vsel %vm167, %v163, 0.0
        %v224 = vadd.f32 %v222, %v223
        %v225 = vsel %vm167, %v164, 0.0
        %v226 = vadd.f32 %v224, %v225
        %v227 = vsel %vm167, %v165, 0.0
        %v228 = vadd.f32 %v226, %v227
        %v229 = vsel %vm167, %v166, 0.0
        %v230 = vadd.f32 %v228, %v229
        %v231 = vrot.slane %v230, 4
        %v232 = vadd.f32 %v230, %v231
        %v233 = vrot.slane %v232, 2
        %v234 = vadd.f32 %v232, %v233
        %v235 = vrot.slane %v234, 1
        %v236 = vadd.f32 %v234, %v235
        %v237 = vmul.f32 %v135, %v135
        %v238 = vmul.f32 %v136, %v136
        %v239 = vmul.f32 %v137, %v137
        %v240 = vmul.f32 %v138, %v138
        %v241 = vmul.f32 %v139, %v139
        %v242 = vmul.f32 %v140, %v140
        %v243 = vmul.f32 %v141, %v141
        %v244 = vmul.f32 %v142, %v142
        %v245 = vmul.f32 %v143, %v143
        %v246 = vmul.f32 %v144, %v144
        %v247 = vmul.f32 %v145, %v145
        %v248 = vmul.f32 %v146, %v146
        %v249 = vmul.f32 %v147, %v147
        %v250 = vmul.f32 %v148, %v148
        %v251 = vmul.f32 %v149, %v149
        %v252 = vmul.f32 %v150, %v150
        %v253 = vmul.f32 %v151, %v151
        %v254 = vmul.f32 %v152, %v152
        %v255 = vmul.f32 %v153, %v153
        %v256 = vmul.f32 %v154, %v154
        %v257 = vmul.f32 %v155, %v155
        %v258 = vmul.f32 %v156, %v156
        %v259 = vmul.f32 %v157, %v157
        %v260 = vmul.f32 %v158, %v158
        %v261 = vmul.f32 %v159, %v159
        %v262 = vmul.f32 %v160, %v160
        %v263 = vmul.f32 %v161, %v161
        %v264 = vmul.f32 %v162, %v162
        %v265 = vmul.f32 %v163, %v163
        %v266 = vmul.f32 %v164, %v164
        %v267 = vmul.f32 %v165, %v165
        %v268 = vmul.f32 %v166, %v166
        %v269 = vsel %vm167, %v237, 0.0
        %v270 = vsel %vm167, %v238, 0.0
        %v271 = vadd.f32 %v269, %v270
        %v272 = vsel %vm167, %v239, 0.0
        %v273 = vadd.f32 %v271, %v272
        %v274 = vsel %vm167, %v240, 0.0
        %v275 = vadd.f32 %v273, %v274
        %v276 = vsel %vm167, %v241, 0.0
        %v277 = vadd.f32 %v275, %v276
        %v278 = vsel %vm167, %v242, 0.0
        %v279 = vadd.f32 %v277, %v278
        %v280 = vsel %vm167, %v243, 0.0
        %v281 = vadd.f32 %v279, %v280
        %v282 = vsel %vm167, %v244, 0.0
        %v283 = vadd.f32 %v281, %v282
        %v284 = vsel %vm167, %v245, 0.0
        %v285 = vadd.f32 %v283, %v284
        %v286 = vsel %vm167, %v246, 0.0
        %v287 = vadd.f32 %v285, %v286
        %v288 = vsel %vm167, %v247, 0.0
        %v289 = vadd.f32 %v287, %v288
        %v290 = vsel %vm167, %v248, 0.0
        %v291 = vadd.f32 %v289, %v290
        %v292 = vsel %vm167, %v249, 0.0
        %v293 = vadd.f32 %v291, %v292
        %v294 = vsel %vm167, %v250, 0.0
        %v295 = vadd.f32 %v293, %v294
        %v296 = vsel %vm167, %v251, 0.0
        %v297 = vadd.f32 %v295, %v296
        %v298 = vsel %vm167, %v252, 0.0
        %v299 = vadd.f32 %v297, %v298
        %v300 = vsel %vm167, %v253, 0.0
        %v301 = vadd.f32 %v299, %v300
        %v302 = vsel %vm167, %v254, 0.0
        %v303 = vadd.f32 %v301, %v302
        %v304 = vsel %vm167, %v255, 0.0
        %v305 = vadd.f32 %v303, %v304
        %v306 = vsel %vm167, %v256, 0.0
        %v307 = vadd.f32 %v305, %v306
        %v308 = vsel %vm167, %v257, 0.0
        %v309 = vadd.f32 %v307, %v308
        %v310 = vsel %vm167, %v258, 0.0
        %v311 = vadd.f32 %v309, %v310
        %v312 = vsel %vm167, %v259, 0.0
        %v313 = vadd.f32 %v311, %v312
        %v314 = vsel %vm167, %v260, 0.0
        %v315 = vadd.f32 %v313, %v314
        %v316 = vsel %vm167, %v261, 0.0
        %v317 = vadd.f32 %v315, %v316
        %v318 = vsel %vm167, %v262, 0.0
        %v319 = vadd.f32 %v317, %v318
        %v320 = vsel %vm167, %v263, 0.0
        %v321 = vadd.f32 %v319, %v320
        %v322 = vsel %vm167, %v264, 0.0
        %v323 = vadd.f32 %v321, %v322
        %v324 = vsel %vm167, %v265, 0.0
        %v325 = vadd.f32 %v323, %v324
        %v326 = vsel %vm167, %v266, 0.0
        %v327 = vadd.f32 %v325, %v326
        %v328 = vsel %vm167, %v267, 0.0
        %v329 = vadd.f32 %v327, %v328
        %v330 = vsel %vm167, %v268, 0.0
        %v331 = vadd.f32 %v329, %v330
        %v332 = vrot.slane %v331, 4
        %v333 = vadd.f32 %v331, %v332
        %v334 = vrot.slane %v333, 2
        %v335 = vadd.f32 %v333, %v334
        %v336 = vrot.slane %v335, 1
        %v337 = vadd.f32 %v335, %v336
        %vm338 = vcmask 1040384
        %v339 = vsel %vm338, %v236, %v337
        %vm340 = vcmask 25600
        %341 = vst.msk [vmem:[%s134] sm:$0x3] %vm340, %v339
        %s342 = sand.u32 %s52, 1
        %s343 = scalar_lea.sflag [#allocation4], %s342
        %s344 = sand.u32 %s52, 1
        %s345 = smul.addr %s344, 2
        %s346 = scalar_lea.vmem [#allocation5], %s345
        // Predicated region
        $region29: #{tpu_custom_call.1} parent=23 // pred_check
          %p347 = pneg %p62
        $region30: #{tpu_custom_call.1} parent=23 // pred_check_branch
          %349 = sbr.rel (%p347) target = $region32
        $region31: #{tpu_custom_call.1} parent=23 // pred_region
          %s351 = ssub.s32 32, 32
          %352 = vsyncadd %s343, %s351
          %s353 = smul.addr %s18, 32
          %s354 = scalar_lea.hbm %s1, %s353
          %s356 = sshll.u32 %s346, 4
          %s357 = int_to_ptr.vmem [resolvable:$true] %s356
          %359 = dma.vmem_to_hbm [thread:$0]  %s357, 32, %s354, %s343
        $region32: #{tpu_custom_call.1} parent=23 // pred_fallthru
          _
      $region24: #{tpu_custom_call.1} parent=5 // pred_fallthru
        _
      %p360 = scmp.le.s32.totalorder 2, %s13
      // Predicated region
      $region33: #{tpu_custom_call.1} parent=5 // pred_check
        %p361 = pneg %p360
      $region34: #{tpu_custom_call.1} parent=5 // pred_check_branch
        %363 = sbr.rel (%p361) target = $region36
      $region35: #{tpu_custom_call.1} parent=5 // pred_region
        %s364 = ssub.s32 %s13, 2
        // Predicated region
        $region37: #{tpu_custom_call.1} parent=35 // pred_check
          %p365 = pneg %p68
        $region38: #{tpu_custom_call.1} parent=35 // pred_check_branch
          %367 = sbr.rel (%p365) target = $region40
        $region39: #{tpu_custom_call.1} parent=35 // pred_region
          %s368 = sand.u32 %s53, 1
          %s369 = scalar_lea.sflag [#allocation4], %s368
          %s370 = sand.u32 %s53, 1
          %s371 = smul.addr %s370, 2
          %s372 = scalar_lea.vmem [#allocation5], %s371
          %373 = dma.done %s369, 32
        $region40: #{tpu_custom_call.1} parent=35 // pred_fallthru
          _
      $region36: #{tpu_custom_call.1} parent=5 // pred_fallthru
        _
    $region6: #{tpu_custom_call.1} parent=1 // loop_footer
      %s17 = sadd.s32 1, %s13
    $region7: #{tpu_custom_call.1} parent=1 // loop_footer_branch
      %12 = sbr.rel target = $region3
    $region8: #{tpu_custom_call.1} parent=1 // loop_exit
      _
    %374 = vsyncpa [#allocation3], 1
    %s375 = scalar_lea.sflag [#allocation3], 1
    %376 = vsyncpa %s375, 1
    %377 = vsyncpa [#allocation4], 1
    %s378 = scalar_lea.sflag [#allocation4], 1
    %379 = vsyncpa %s378, 1

</llo_original>
